<compile_context>
chip_gen: v6e
topology: v6e:2x2x1
jax: 0.10.0
libtpu: 0.0.40
codegen_flags: <defaults>
</compile_context>

<pallas_src>
import functools

import jax
import jax.numpy as jnp
from jax.experimental import pallas as pl
from jax.experimental.pallas import tpu as pltpu

_LANE = 128      # vreg lane width
_SUBLANE = 8     # vreg sublane height -> batch tile multiple of this


def _round_up(v, m):
    return (v + m - 1) // m * m


def _cdiv(a, b):
    return -(-a // b)


def _tpu_hw_info():
    """(vmem_capacity_bytes, num_tensorcores) with conservative fallbacks."""
    vmem_cap = 64 << 20   # conservative: legal on every generation (v7x floor)
    n_cores = 1
    try:
        info = pltpu.get_tpu_info()
        vmem_cap = int(getattr(info, "vmem_capacity_bytes", vmem_cap))
        for attr in ("num_cores", "tensorcores_per_chip", "cores_per_chip"):
            v = getattr(info, attr, None)
            if v:
                n_cores = int(v)
                break
    except Exception:
        pass
    return vmem_cap, n_cores


def _mlp_kernel(x_ref, w1_ref, b1_ref, w2_ref, b2_ref, w3_ref, b3_ref, y_ref):
    # Cast activations to the weight (compute) dtype inside the kernel; all
    # accumulation, bias-add, ReLU and sigmoid stay in f32.
    x = x_ref[...].astype(w1_ref.dtype)
    # Layer 1: Linear + ReLU (MXU matmul, f32 accumulate)
    h = jnp.dot(x, w1_ref[...], preferred_element_type=jnp.float32)
    h = jnp.maximum(h + b1_ref[...], 0.0)
    # Layer 2: Linear + ReLU
    h = jnp.dot(h.astype(w2_ref.dtype), w2_ref[...],
                preferred_element_type=jnp.float32)
    h = jnp.maximum(h + b2_ref[...], 0.0)
    # Output layer: Linear + sigmoid
    h = jnp.dot(h.astype(w3_ref.dtype), w3_ref[...],
                preferred_element_type=jnp.float32)
    y_ref[...] = jax.nn.sigmoid(h + b3_ref[...]).astype(y_ref.dtype)


def prepare_deepnet_params(params, compute_dtype=jnp.bfloat16):
    """One-time param prep (hoisted out of the forward): cast weights to the
    MXU compute dtype, keep biases as (1, out) f32 rows.  No padding needed."""
    cdt = jnp.dtype(compute_dtype)
    out = {}
    for i in (1, 2, 3):
        out[f"w{i}"] = jnp.asarray(params[f"w{i}"]).astype(cdt)
        out[f"b{i}"] = jnp.asarray(params[f"b{i}"]).reshape(1, -1).astype(jnp.float32)
    return out


@functools.partial(jax.jit, static_argnames=("block_b", "out_dtype"))
def deepnet_forward(x, params, block_b=512, out_dtype=jnp.float32):
    """x: (B, dim_x) f32.  params: prepared dict w1,b1,w2,b2,w3,b3 (weights (in,out))."""
    w1, b1 = params["w1"], params["b1"]
    w2, b2 = params["w2"], params["b2"]
    w3, b3 = params["w3"], params["b3"]

    B, dim_x = x.shape
    h0, h1, dim_y = w1.shape[1], w2.shape[1], w3.shape[1]
    cdt = jnp.dtype(w1.dtype)
    odt = jnp.dtype(out_dtype)

    vmem_cap, n_cores = _tpu_hw_info()
    vmem_budget = int(vmem_cap * 3 // 4)   # headroom for compiler scratch/sems

    # ---- batch tile: large, sublane(8)-aligned, no batch padding.
    bb = max(_SUBLANE, min(int(block_b), _round_up(B, _SUBLANE)))
    bb = _round_up(bb, _SUBLANE)

    # Only balance the grid across TensorCores on chips that have >= 2 of them
    # (v7x); on v5e/v6e the grid is a serial loop, so bigger tiles win.
    if n_cores >= 2:
        steps = _cdiv(B, bb)
        if steps == 1 and bb > _SUBLANE:
            bb = max(_SUBLANE, _round_up(_cdiv(B, 2), _SUBLANE))
        elif steps > 1 and steps % 2 == 1:
            bb = max(_SUBLANE, _round_up(_cdiv(B, steps + 1), _SUBLANE))

    # ---- honest VMEM accounting (weights single-buffered via Buffered(1);
    #      in-iteration f32 intermediates counted once, not pipelined).
    bytes_wb = ((w1.size + w2.size + w3.size) * cdt.itemsize
                + (b1.size + b2.size + b3.size) * 4)

    def vmem_need(tile_b):
        return (
            2 * tile_b * dim_x * x.dtype.itemsize                     # x block (double-buffered)
            + 2 * tile_b * dim_y * odt.itemsize                       # y block (double-buffered)
            + bytes_wb                                                # resident weights/biases (1x)
            + tile_b * _round_up(dim_x, _LANE) * cdt.itemsize         # in-kernel x cast
            + tile_b * (_round_up(h0, _LANE) + _round_up(h1, _LANE)
                        + _round_up(dim_y, _LANE)) * 4                # f32 intermediates
        )

    while bb > _SUBLANE and vmem_need(bb) + (8 << 20) > vmem_budget:
        bb = max(_SUBLANE, _round_up(bb // 2, _SUBLANE))

    grid = (_cdiv(B, bb),)
    vmem_limit = int(min(max(vmem_need(bb) + (8 << 20), 16 << 20), vmem_budget))

    # ---- BlockSpecs: x / y tiled over batch only, full (unpadded) feature
    #      width; weights/biases resident & single-buffered.
    x_spec = pl.BlockSpec((bb, dim_x), lambda i: (i, 0))
    y_spec = pl.BlockSpec((bb, dim_y), lambda i: (i, 0))

    def resident(arr):
        return pl.BlockSpec(arr.shape, lambda i: (0, 0),
                            pipeline_mode=pl.Buffered(1))

    # Advisory scheduling hint for XLA around the custom call (actual sizes).
    flops = 2 * B * (dim_x * h0 + h0 * h1 + h1 * dim_y)
    transcendentals = B * dim_y  # sigmoid exp
    bytes_accessed = (B * dim_x * x.dtype.itemsize
                      + B * dim_y * odt.itemsize
                      + bytes_wb)

    # TODO(synk): on v7x, if profiling shows "parallel" does not shard the
    # batch grid across the 2 TensorCores, switch to pltpu.CORE_PARALLEL.
    out = pl.pallas_call(
        _mlp_kernel,
        out_shape=jax.ShapeDtypeStruct((B, dim_y), odt),
        grid_spec=pltpu.PrefetchScalarGridSpec(
            num_scalar_prefetch=0,
            grid=grid,
            in_specs=[
                x_spec,
                resident(w1), resident(b1),
                resident(w2), resident(b2),
                resident(w3), resident(b3),
            ],
            out_specs=y_spec,
        ),
        compiler_params=pltpu.CompilerParams(
            dimension_semantics=("parallel",),
            vmem_limit_bytes=vmem_limit,
        ),
        cost_estimate=pl.CostEstimate(
            flops=flops,
            transcendentals=transcendentals,
            bytes_accessed=bytes_accessed,
        ),
    )(x, w1, b1, w2, b2, w3, b3)

    return out


def init_deepnet_params(key, dim_x, dim_y, hidden):
    """Deterministic init mirroring nn.Linear (weights stored (in, out))."""
    h0, h1 = hidden
    ks = jax.random.split(key, 6)

    def linear(kw, kb, fan_in, fan_out):
        bound = 1.0 / float(fan_in) ** 0.5
        w = jax.random.uniform(kw, (fan_in, fan_out), jnp.float32, -bound, bound)
        b = jax.random.uniform(kb, (1, fan_out), jnp.float32, -bound, bound)
        return w, b

    w1, b1 = linear(ks[0], ks[1], dim_x, h0)
    w2, b2 = linear(ks[2], ks[3], h0, h1)
    w3, b3 = linear(ks[4], ks[5], h1, dim_y)
    return {"w1": w1, "b1": b1, "w2": w2, "b2": b2, "w3": w3, "b3": b3}


def deepnet_reference(x, p, compute_dtype=jnp.float32):
    """Pure-JAX reference of DeepNet.forward (matmul operands in compute_dtype)."""
    cdt = jnp.dtype(compute_dtype)
    h = jnp.dot(x.astype(cdt), p["w1"].astype(cdt),
                preferred_element_type=jnp.float32) + p["b1"]
    h = jnp.maximum(h, 0.0)
    h = jnp.dot(h.astype(cdt), p["w2"].astype(cdt),
                preferred_element_type=jnp.float32) + p["b2"]
    h = jnp.maximum(h, 0.0)
    h = jnp.dot(h.astype(cdt), p["w3"].astype(cdt),
                preferred_element_type=jnp.float32) + p["b3"]
    return jax.nn.sigmoid(h)


if __name__ == "__main__":
    # Small shapes consistent with DeepNet(dim_x, dim_y, hidden=[h0, h1]).
    B, dim_x, dim_y = 8, 32, 16
    hidden = (64, 32)

    key = jax.random.PRNGKey(0)
    kx, kp = jax.random.split(key)
    x = jax.random.normal(kx, (B, dim_x), jnp.float32)
    raw_params = init_deepnet_params(kp, dim_x, dim_y, hidden)

    # Default path: bf16 matmul operands (prepared ONCE), f32 accumulation.
    params_bf16 = prepare_deepnet_params(raw_params, jnp.bfloat16)
    y = jax.block_until_ready(deepnet_forward(x, params_bf16))
    assert y.shape == (B, dim_y)

    y_ref_bf16 = deepnet_reference(x, raw_params, compute_dtype=jnp.bfloat16)
    assert jnp.allclose(y, y_ref_bf16, atol=2e-3, rtol=2e-3), "mismatch vs bf16 reference"

    y_ref_f32 = deepnet_reference(x, raw_params, compute_dtype=jnp.float32)
    assert jnp.allclose(y, y_ref_f32, atol=5e-2, rtol=5e-2), "mismatch vs f32 reference"

    # Full-f32 kernel path (e.g. when bf16 is not wanted).
    params_f32 = prepare_deepnet_params(raw_params, jnp.float32)
    y32 = jax.block_until_ready(deepnet_forward(x, params_f32))
    assert jnp.allclose(y32, y_ref_f32, atol=1e-4, rtol=1e-4), "f32 path mismatch"

    print("KERNEL_OK")
</pallas_src>

<mosaic_0001>
module attributes {stable_mosaic.version = 11 : i64} {
  func.func @_mlp_kernel(%arg0: i32, %arg1: memref<8x32xf32, #tpu.memory_space<vmem>>, %arg2: memref<32x64xbf16, #tpu.memory_space<vmem>>, %arg3: memref<1x64xf32, #tpu.memory_space<vmem>>, %arg4: memref<64x32xbf16, #tpu.memory_space<vmem>>, %arg5: memref<1x32xf32, #tpu.memory_space<vmem>>, %arg6: memref<32x16xbf16, #tpu.memory_space<vmem>>, %arg7: memref<1x16xf32, #tpu.memory_space<vmem>>, %arg8: memref<8x16xf32, #tpu.memory_space<vmem>>) attributes {dimension_semantics = [#tpu.dimension_semantics<parallel>], iteration_bounds = array<i64: 1>, scalar_prefetch = 0 : i64, scratch_operands = 0 : i64, tpu.core_type = #tpu.core_type<tc>, window_params = [{transform_indices = @transform_0, window_bounds = array<i64: 8, 32>}, {pipeline_mode = #tpu.pipeline_mode<synchronous>, transform_indices = @transform_1, window_bounds = array<i64: 32, 64>}, {pipeline_mode = #tpu.pipeline_mode<synchronous>, transform_indices = @transform_2, window_bounds = array<i64: 1, 64>}, {pipeline_mode = #tpu.pipeline_mode<synchronous>, transform_indices = @transform_3, window_bounds = array<i64: 64, 32>}, {pipeline_mode = #tpu.pipeline_mode<synchronous>, transform_indices = @transform_4, window_bounds = array<i64: 1, 32>}, {pipeline_mode = #tpu.pipeline_mode<synchronous>, transform_indices = @transform_5, window_bounds = array<i64: 32, 16>}, {pipeline_mode = #tpu.pipeline_mode<synchronous>, transform_indices = @transform_6, window_bounds = array<i64: 1, 16>}, {transform_indices = @transform_7, window_bounds = array<i64: 8, 16>}]} {
    %c0 = arith.constant 0 : index
    %c0_0 = arith.constant 0 : index
    %0 = vector.load %arg1[%c0, %c0_0] : memref<8x32xf32, #tpu.memory_space<vmem>>, vector<8x32xf32>
    %1 = arith.truncf %0 : vector<8x32xf32> to vector<8x32xbf16>
    %c0_1 = arith.constant 0 : index
    %c0_2 = arith.constant 0 : index
    %2 = vector.load %arg2[%c0_1, %c0_2] : memref<32x64xbf16, #tpu.memory_space<vmem>>, vector<32x64xbf16>
    %cst = arith.constant dense<0.000000e+00> : vector<8x64xf32>
    %3 = tpu.matmul %1, %2, %cst {dimension_numbers = #tpu.dot_dimension_numbers<[1], [0], [0], [1], [0, 0, 1, 1], [], []>} : vector<8x32xbf16>, vector<32x64xbf16>, vector<8x64xf32> -> vector<8x64xf32>
    %c0_3 = arith.constant 0 : index
    %c0_4 = arith.constant 0 : index
    %4 = vector.load %arg3[%c0_3, %c0_4] : memref<1x64xf32, #tpu.memory_space<vmem>>, vector<1x64xf32>
    %5 = vector.broadcast %4 : vector<1x64xf32> to vector<8x64xf32>
    %6 = arith.addf %3, %5 : vector<8x64xf32>
    %cst_5 = arith.constant 0.000000e+00 : f32
    %7 = vector.broadcast %cst_5 : f32 to vector<8x64xf32>
    %8 = arith.maximumf %6, %7 : vector<8x64xf32>
    %9 = arith.truncf %8 : vector<8x64xf32> to vector<8x64xbf16>
    %c0_6 = arith.constant 0 : index
    %c0_7 = arith.constant 0 : index
    %10 = vector.load %arg4[%c0_6, %c0_7] : memref<64x32xbf16, #tpu.memory_space<vmem>>, vector<64x32xbf16>
    %cst_8 = arith.constant dense<0.000000e+00> : vector<8x32xf32>
    %11 = tpu.matmul %9, %10, %cst_8 {dimension_numbers = #tpu.dot_dimension_numbers<[1], [0], [0], [1], [0, 0, 1, 1], [], []>} : vector<8x64xbf16>, vector<64x32xbf16>, vector<8x32xf32> -> vector<8x32xf32>
    %c0_9 = arith.constant 0 : index
    %c0_10 = arith.constant 0 : index
    %12 = vector.load %arg5[%c0_9, %c0_10] : memref<1x32xf32, #tpu.memory_space<vmem>>, vector<1x32xf32>
    %13 = vector.broadcast %12 : vector<1x32xf32> to vector<8x32xf32>
    %14 = arith.addf %11, %13 : vector<8x32xf32>
    %cst_11 = arith.constant 0.000000e+00 : f32
    %15 = vector.broadcast %cst_11 : f32 to vector<8x32xf32>
    %16 = arith.maximumf %14, %15 : vector<8x32xf32>
    %17 = arith.truncf %16 : vector<8x32xf32> to vector<8x32xbf16>
    %c0_12 = arith.constant 0 : index
    %c0_13 = arith.constant 0 : index
    %18 = vector.load %arg6[%c0_12, %c0_13] : memref<32x16xbf16, #tpu.memory_space<vmem>>, vector<32x16xbf16>
    %cst_14 = arith.constant dense<0.000000e+00> : vector<8x16xf32>
    %19 = tpu.matmul %17, %18, %cst_14 {dimension_numbers = #tpu.dot_dimension_numbers<[1], [0], [0], [1], [0, 0, 1, 1], [], []>} : vector<8x32xbf16>, vector<32x16xbf16>, vector<8x16xf32> -> vector<8x16xf32>
    %c0_15 = arith.constant 0 : index
    %c0_16 = arith.constant 0 : index
    %20 = vector.load %arg7[%c0_15, %c0_16] : memref<1x16xf32, #tpu.memory_space<vmem>>, vector<1x16xf32>
    %21 = vector.broadcast %20 : vector<1x16xf32> to vector<8x16xf32>
    %22 = arith.addf %19, %21 : vector<8x16xf32>
    %23 = arith.negf %22 : vector<8x16xf32>
    %24 = math.exp %23 : vector<8x16xf32>
    %cst_17 = arith.constant 1.000000e+00 : f32
    %25 = vector.broadcast %cst_17 : f32 to vector<8x16xf32>
    %26 = arith.addf %25, %24 : vector<8x16xf32>
    %27 = arith.divf %25, %26 : vector<8x16xf32>
    %c0_18 = arith.constant 0 : index
    %c0_19 = arith.constant 0 : index
    %28 = vector.load %arg8[%c0_18, %c0_19] : memref<8x16xf32, #tpu.memory_space<vmem>>, vector<8x16xf32>
    tpu.vector_store %arg8[%c0_18, %c0_19], %27 {strides = array<i32>} : memref<8x16xf32, #tpu.memory_space<vmem>>, vector<8x16xf32>,
    return
  }
  func.func @transform_0(%arg0: i32) -> (i32, i32) {
    %c0_i32 = arith.constant 0 : i32
    %c0_i32_0 = arith.constant 0 : i32
    return %arg0, %c0_i32 : i32, i32
  }
  func.func @transform_1(%arg0: i32) -> (i32, i32) {
    %c0_i32 = arith.constant 0 : i32
    %c0_i32_0 = arith.constant 0 : i32
    %c0_i32_1 = arith.constant 0 : i32
    return %c0_i32, %c0_i32_0 : i32, i32
  }
  func.func @transform_2(%arg0: i32) -> (i32, i32) {
    %c0_i32 = arith.constant 0 : i32
    %c0_i32_0 = arith.constant 0 : i32
    %c0_i32_1 = arith.constant 0 : i32
    return %c0_i32, %c0_i32_0 : i32, i32
  }
  func.func @transform_3(%arg0: i32) -> (i32, i32) {
    %c0_i32 = arith.constant 0 : i32
    %c0_i32_0 = arith.constant 0 : i32
    %c0_i32_1 = arith.constant 0 : i32
    return %c0_i32, %c0_i32_0 : i32, i32
  }
  func.func @transform_4(%arg0: i32) -> (i32, i32) {
    %c0_i32 = arith.constant 0 : i32
    %c0_i32_0 = arith.constant 0 : i32
    %c0_i32_1 = arith.constant 0 : i32
    return %c0_i32, %c0_i32_0 : i32, i32
  }
  func.func @transform_5(%arg0: i32) -> (i32, i32) {
    %c0_i32 = arith.constant 0 : i32
    %c0_i32_0 = arith.constant 0 : i32
    %c0_i32_1 = arith.constant 0 : i32
    return %c0_i32, %c0_i32_0 : i32, i32
  }
  func.func @transform_6(%arg0: i32) -> (i32, i32) {
    %c0_i32 = arith.constant 0 : i32
    %c0_i32_0 = arith.constant 0 : i32
    %c0_i32_1 = arith.constant 0 : i32
    return %c0_i32, %c0_i32_0 : i32, i32
  }
  func.func @transform_7(%arg0: i32) -> (i32, i32) {
    %c0_i32 = arith.constant 0 : i32
    %c0_i32_0 = arith.constant 0 : i32
    return %arg0, %c0_i32 : i32, i32
  }
}

</mosaic_0001>

<llo_original>
// kernel: deepnet_forward.1
$region0: #{deepnet_forward.1}
  #allocation0 [shape = 'u32[]', space=smem, size = 0x4, offset = 0x4, fixed_abs, tag = 'smem constant byte address 0x4 - core index']
  #allocation1 [shape = 'u32[144,128]{1,0:T(1,128)}', space=vmem, size = 0x12000, scoped, tag = 'internal scratch']
  %s0 = inlined_call_operand.vmem [shape: f32[8,32], index: 0, kind: input, shape index: {}]
  %s1 = inlined_call_operand.vmem [shape: bf16[32,64], index: 1, kind: input, shape index: {}]
  %s2 = inlined_call_operand.vmem [shape: f32[1,64], index: 2, kind: input, shape index: {}]
  %s3 = inlined_call_operand.vmem [shape: bf16[64,32], index: 3, kind: input, shape index: {}]
  %s4 = inlined_call_operand.vmem [shape: f32[1,32], index: 4, kind: input, shape index: {}]
  %s5 = inlined_call_operand.vmem [shape: bf16[32,16], index: 5, kind: input, shape index: {}]
  %s6 = inlined_call_operand.vmem [shape: f32[1,16], index: 6, kind: input, shape index: {}]
  %s7 = inlined_call_operand.hbm [shape: f32[8,16], index: 7, kind: output, shape index: {}]
  %s8 = sld [smem:[#allocation0]]
  $region38: #{deepnet_forward.1} parent=0
    _
  %s10 = ssub.s32 1, %s8
  %s11 = scalar_select 0, %s10, %s8
  $region1: #{deepnet_forward.1} parent=0
    #allocation2 [shape = 'u8[4096]{0}', space=vmem, size = 0x1000, scoped, tag = 'output window, operand 0, single buffered']
    #allocation3 [shape = 's32[1]{0}', space=sflag, size = 0x4, scoped, tag = 'scoped memory for deepnet_forward.1']
    %12 = vsyncpa [#allocation3], 0
    // Predicated region
    $region2: #{deepnet_forward.1} parent=1 // pred_check
      _
    $region3: #{deepnet_forward.1} parent=1 // pred_check_branch
      %14 = sbr.rel (0) target = $region5
    $region4: #{deepnet_forward.1} parent=1 // pred_region
      _
    $region5: #{deepnet_forward.1} parent=1 // pred_fallthru
      _
    // Predicated region
    $region6: #{deepnet_forward.1} parent=1 // pred_check
      _
    $region7: #{deepnet_forward.1} parent=1 // pred_check_branch
      %16 = sbr.rel (0) target = $region9
    $region8: #{deepnet_forward.1} parent=1 // pred_region
      _
    $region9: #{deepnet_forward.1} parent=1 // pred_fallthru
      _
    // Predicated region
    $region10: #{deepnet_forward.1} parent=1 // pred_check
      _
    $region11: #{deepnet_forward.1} parent=1 // pred_check_branch
      %18 = sbr.rel (0) target = $region13
    $region12: #{deepnet_forward.1} parent=1 // pred_region
      _
    $region13: #{deepnet_forward.1} parent=1 // pred_fallthru
      _
    // Predicated region
    $region14: #{deepnet_forward.1} parent=1 // pred_check
      _
    $region15: #{deepnet_forward.1} parent=1 // pred_check_branch
      %20 = sbr.rel (0) target = $region17
    $region16: #{deepnet_forward.1} parent=1 // pred_region
      _
    $region17: #{deepnet_forward.1} parent=1 // pred_fallthru
      _
    // Predicated region
    $region18: #{deepnet_forward.1} parent=1 // pred_check
      _
    $region19: #{deepnet_forward.1} parent=1 // pred_check_branch
      %22 = sbr.rel (0) target = $region21
    $region20: #{deepnet_forward.1} parent=1 // pred_region
      _
    $region21: #{deepnet_forward.1} parent=1 // pred_fallthru
      _
    // Predicated region
    $region22: #{deepnet_forward.1} parent=1 // pred_check
      _
    $region23: #{deepnet_forward.1} parent=1 // pred_check_branch
      %24 = sbr.rel (0) target = $region25
    $region24: #{deepnet_forward.1} parent=1 // pred_region
      _
    $region25: #{deepnet_forward.1} parent=1 // pred_fallthru
      _
    // Predicated region
    $region26: #{deepnet_forward.1} parent=1 // pred_check
      _
    $region27: #{deepnet_forward.1} parent=1 // pred_check_branch
      %26 = sbr.rel (0) target = $region29
    $region28: #{deepnet_forward.1} parent=1 // pred_region
      _
    $region29: #{deepnet_forward.1} parent=1 // pred_fallthru
      _
    %v28 = vld [vmem:[%s0] sm:$0xff]
    %v29 = vpack.c.bf16 %v28, %v28
    %v30 = vld [vmem:[%s1] sm:$0xf]
    %v31 = vld [vmem:[%s1 + $0x4] sm:$0xf]
    %v32 = vld [vmem:[%s1 + $0x8] sm:$0xf]
    %v33 = vld [vmem:[%s1 + $0xc] sm:$0xf]
    %v34 = vld [vmem:[%s2] sm:$0x1]
    %v36 = vlaneseq
    %v37 = vshrl.u32 %v36, 7
    %v38 = vsub.s32 0, %v37
    %v39 = vrot.slane %v34, %v38
    %v45 = vunpack.c.l.b16 %v30
    %v46 = vunpack.c.l.b16 %v31
    %v47 = vunpack.c.l.b16 %v32
    %v48 = vunpack.c.l.b16 %v33
    %v49 = vpack.c.b16 %v46, %v45
    %v50 = vpack.c.b16 %v48, %v47
    %vm53 = vcmask 261120
    %v55 = vsel %vm53, %v29, 0
    %57 = vmatprep.subr.bf16.mxu0 0
    %58 = vmatpush1.bf16.msra.mxu0 0
    %59 = vmatprep.subr.bf16.mxu0 0
    %60 = vmatpush1.bf16.msra.mxu0 0
    %61 = vmatprep.subr.bf16.mxu0 0
    %62 = vmatpush1.bf16.msra.mxu0 0
    %63 = vmatprep.subr.bf16.mxu0 0
    %64 = vmatpush1.bf16.msra.mxu0 0
    %65 = vmatprep.subr.bf16.mxu0 0
    %66 = vmatpush1.bf16.msra.mxu0 0
    %67 = vmatprep.subr.bf16.mxu0 0
    %68 = vmatpush1.bf16.msra.mxu0 0
    %69 = vmatprep.subr.bf16.mxu0 0
    %70 = vmatpush1.bf16.msra.mxu0 %v50
    %71 = vmatprep.subr.bf16.mxu0 0
    %72 = vmatpush1.bf16.msra.mxu0 %v49
    %73 = vmatprep.subr.bf16.mxu0 0
    %74 = vmatpush2.bf16.msra.mxu0 0
    %75 = vmatprep.subr.bf16.mxu0 0
    %76 = vmatpush2.bf16.msra.mxu0 0
    %77 = vmatprep.subr.bf16.mxu0 0
    %78 = vmatpush2.bf16.msra.mxu0 0
    %79 = vmatprep.subr.bf16.mxu0 0
    %80 = vmatpush2.bf16.msra.mxu0 0
    %81 = vmatprep.subr.bf16.mxu0 0
    %82 = vmatpush2.bf16.msra.mxu0 0
    %83 = vmatprep.subr.bf16.mxu0 0
    %84 = vmatpush2.bf16.msra.mxu0 0
    %85 = vmatprep.subr.bf16.mxu0 0
    %86 = vmatpush2.bf16.msra.mxu0 0
    %87 = vmatprep.subr.bf16.mxu0 0
    %88 = vmatpush2.bf16.msra.mxu0 0
    %89 = vmatprep.mubr.bf16.mxu0 0
    %90 = vmatmul.mubr.bf16.gmra.mxu0 %v55
    %v91 = vpop.f32.mrf.mxu0
    %v92 = vadd.f32 %v39, %v91
    %v93 = vpop.f32.mrf.mxu0
    %v94 = vpop.f32.mrf.mxu0
    %v95 = vpop.f32.mrf.mxu0
    %96 = vdwg.mxu0
    %v97 = vmax.f32 %v92, 0.0
    %v98 = vpack.c.bf16 %v97, %v97
    %v99 = vld [vmem:[%s3] sm:$0xf]
    %v100 = vld [vmem:[%s3 + $0x4] sm:$0xf]
    %v101 = vld [vmem:[%s3 + $0x8] sm:$0xf]
    %v102 = vld [vmem:[%s3 + $0xc] sm:$0xf]
    %v103 = vld [vmem:[%s3 + $0x10] sm:$0xf]
    %v104 = vld [vmem:[%s3 + $0x14] sm:$0xf]
    %v105 = vld [vmem:[%s3 + $0x18] sm:$0xf]
    %v106 = vld [vmem:[%s3 + $0x1c] sm:$0xf]
    %v107 = vld [vmem:[%s4] sm:$0x1]
    %v109 = vlaneseq
    %v110 = vshrl.u32 %v109, 7
    %v111 = vsub.s32 0, %v110
    %v112 = vrot.slane %v107, %v111
    %v122 = vunpack.c.l.b16 %v99
    %v123 = vunpack.c.l.b16 %v100
    %v124 = vunpack.c.l.b16 %v101
    %v125 = vunpack.c.l.b16 %v102
    %v126 = vunpack.c.l.b16 %v103
    %v127 = vunpack.c.l.b16 %v104
    %v128 = vunpack.c.l.b16 %v105
    %v129 = vunpack.c.l.b16 %v106
    %v130 = vpack.c.b16 %v123, %v122
    %v131 = vpack.c.b16 %v125, %v124
    %v132 = vpack.c.b16 %v127, %v126
    %v133 = vpack.c.b16 %v129, %v128
    %vm138 = vcmask 523264
    %v140 = vsel %vm138, %v98, 0
    %142 = vmatprep.subr.bf16.mxu0 0
    %143 = vmatpush1.bf16.msra.mxu0 0
    %144 = vmatprep.subr.bf16.mxu0 0
    %145 = vmatpush1.bf16.msra.mxu0 0
    %146 = vmatprep.subr.bf16.mxu0 0
    %147 = vmatpush1.bf16.msra.mxu0 0
    %148 = vmatprep.subr.bf16.mxu0 0
    %149 = vmatpush1.bf16.msra.mxu0 0
    %150 = vmatprep.subr.bf16.mxu0 0
    %151 = vmatpush1.bf16.msra.mxu0 %v133
    %152 = vmatprep.subr.bf16.mxu0 0
    %153 = vmatpush1.bf16.msra.mxu0 %v132
    %154 = vmatprep.subr.bf16.mxu0 0
    %155 = vmatpush1.bf16.msra.mxu0 %v131
    %156 = vmatprep.subr.bf16.mxu0 0
    %157 = vmatpush1.bf16.msra.mxu0 %v130
    %158 = vmatprep.subr.bf16.mxu0 0
    %159 = vmatpush2.bf16.msra.mxu0 0
    %160 = vmatprep.subr.bf16.mxu0 0
    %161 = vmatpush2.bf16.msra.mxu0 0
    %162 = vmatprep.subr.bf16.mxu0 0
    %163 = vmatpush2.bf16.msra.mxu0 0
    %164 = vmatprep.subr.bf16.mxu0 0
    %165 = vmatpush2.bf16.msra.mxu0 0
    %166 = vmatprep.subr.bf16.mxu0 0
    %167 = vmatpush2.bf16.msra.mxu0 0
    %168 = vmatprep.subr.bf16.mxu0 0
    %169 = vmatpush2.bf16.msra.mxu0 0
    %170 = vmatprep.subr.bf16.mxu0 0
    %171 = vmatpush2.bf16.msra.mxu0 0
    %172 = vmatprep.subr.bf16.mxu0 0
    %173 = vmatpush2.bf16.msra.mxu0 0
    %174 = vmatprep.mubr.bf16.mxu0 0
    %175 = vmatmul.mubr.bf16.gmra.mxu0 %v140
    %v176 = vpop.f32.mrf.mxu0
    %v177 = vadd.f32 %v112, %v176
    %v178 = vpop.f32.mrf.mxu0
    %v179 = vpop.f32.mrf.mxu0
    %v180 = vpop.f32.mrf.mxu0
    %181 = vdwg.mxu0
    %v182 = vmax.f32 %v177, 0.0
    %v183 = vpack.c.bf16 %v182, %v182
    %v184 = vld [vmem:[%s5] sm:$0xf]
    %v185 = vld [vmem:[%s5 + $0x4] sm:$0xf]
    %v186 = vld [vmem:[%s5 + $0x8] sm:$0xf]
    %v187 = vld [vmem:[%s5 + $0xc] sm:$0xf]
    %v188 = vld [vmem:[%s6] sm:$0x1]
    %v190 = vlaneseq
    %v191 = vshrl.u32 %v190, 7
    %v192 = vsub.s32 0, %v191
    %v193 = vrot.slane %v188, %v192
    %v199 = vunpack.c.l.b16 %v184
    %v200 = vunpack.c.l.b16 %v185
    %v201 = vunpack.c.l.b16 %v186
    %v202 = vunpack.c.l.b16 %v187
    %v203 = vpack.c.b16 %v200, %v199
    %v204 = vpack.c.b16 %v202, %v201
    %v208 = vsel %vm53, %v183, 0
    %210 = vmatprep.subr.bf16.mxu0 0
    %211 = vmatpush1.bf16.msra.mxu0 0
    %212 = vmatprep.subr.bf16.mxu0 0
    %213 = vmatpush1.bf16.msra.mxu0 0
    %214 = vmatprep.subr.bf16.mxu0 0
    %215 = vmatpush1.bf16.msra.mxu0 0
    %216 = vmatprep.subr.bf16.mxu0 0
    %217 = vmatpush1.bf16.msra.mxu0 0
    %218 = vmatprep.subr.bf16.mxu0 0
    %219 = vmatpush1.bf16.msra.mxu0 0
    %220 = vmatprep.subr.bf16.mxu0 0
    %221 = vmatpush1.bf16.msra.mxu0 0
    %222 = vmatprep.subr.bf16.mxu0 0
    %223 = vmatpush1.bf16.msra.mxu0 %v204
    %224 = vmatprep.subr.bf16.mxu0 0
    %225 = vmatpush1.bf16.msra.mxu0 %v203
    %226 = vmatprep.subr.bf16.mxu0 0
    %227 = vmatpush2.bf16.msra.mxu0 0
    %228 = vmatprep.subr.bf16.mxu0 0
    %229 = vmatpush2.bf16.msra.mxu0 0
    %230 = vmatprep.subr.bf16.mxu0 0
    %231 = vmatpush2.bf16.msra.mxu0 0
    %232 = vmatprep.subr.bf16.mxu0 0
    %233 = vmatpush2.bf16.msra.mxu0 0
    %234 = vmatprep.subr.bf16.mxu0 0
    %235 = vmatpush2.bf16.msra.mxu0 0
    %236 = vmatprep.subr.bf16.mxu0 0
    %237 = vmatpush2.bf16.msra.mxu0 0
    %238 = vmatprep.subr.bf16.mxu0 0
    %239 = vmatpush2.bf16.msra.mxu0 0
    %240 = vmatprep.subr.bf16.mxu0 0
    %241 = vmatpush2.bf16.msra.mxu0 0
    %242 = vmatprep.mubr.bf16.mxu0 0
    %243 = vmatmul.mubr.bf16.gmra.mxu0 %v208
    %v244 = vpop.f32.mrf.mxu0
    %v245 = vadd.f32 %v193, %v244
    %v246 = vpop.f32.mrf.mxu0
    %v247 = vpop.f32.mrf.mxu0
    %v248 = vpop.f32.mrf.mxu0
    %249 = vdwg.mxu0
    %v250 = vxor.u32 %v245, 2147483648
    %v251 = vmul.f32 %v250, 1.442695
    %v252 = vpow.pop %v251
    %v253 = vadd.f32 %v252, 1.0
    %v254 = vrcp.pop %v253
    %v255 = vmul.f32 1.0, %v254
    %vm256 = vcmask 130048
    %257 = vst.msk [vmem:[#allocation2] sm:$0xff] %vm256, %v255
    // Predicated region
    $region30: #{deepnet_forward.1} parent=1 // pred_check
      _
    $region31: #{deepnet_forward.1} parent=1 // pred_check_branch
      %259 = sbr.rel (0) target = $region33
    $region32: #{deepnet_forward.1} parent=1 // pred_region
      %s261 = ssub.s32 128, 128
      %262 = vsyncadd [#allocation3], %s261
      %s264 = sshll.u32 [#allocation2], 4
      %s265 = int_to_ptr.vmem [resolvable:$true] %s264
      %267 = dma.vmem_to_hbm [thread:$0]  %s265, 128, %s7, [#allocation3]
    $region33: #{deepnet_forward.1} parent=1 // pred_fallthru
      _
    // Predicated region
    $region34: #{deepnet_forward.1} parent=1 // pred_check
      _
    $region35: #{deepnet_forward.1} parent=1 // pred_check_branch
      %269 = sbr.rel (0) target = $region37
    $region36: #{deepnet_forward.1} parent=1 // pred_region
      %270 = dma.done [#allocation3], 128
    $region37: #{deepnet_forward.1} parent=1 // pred_fallthru
      _
    %271 = vsyncpa [#allocation3], 1

</llo_original>
